<compile_context>
chip_gen: v5e
topology: v5e:2x2
jax: 0.10.0
libtpu: 0.0.40
codegen_flags: <defaults>
</compile_context>

<pallas_src>
import math

import jax
import jax.numpy as jnp
import numpy as np
from jax.experimental import pallas as pl
from jax.experimental.pallas import tpu as pltpu


def _action_lstm_kernel(x_ref, wih_ref, whh_ref, bg_ref, wout_ref, bout_ref,
                        y_ref, h_scr, c_scr):
    # x_ref:    (1, B, A)   current timestep input
    # wih_ref:  (4, A, H)   per-gate input weights, already transposed to (in, out)
    # whh_ref:  (4, H, H)   per-gate recurrent weights, already transposed
    # bg_ref:   (4, 1, H)   per-gate combined bias (b_ih + b_hh)
    # wout_ref: (H, A)      output-layer weight, already transposed
    # bout_ref: (1, A)      output-layer bias
    # y_ref:    (1, B, A)   per-timestep distribution parameters
    # h_scr, c_scr: (B, H)  f32 carry, persistent across grid steps
    t = pl.program_id(0)

    @pl.when(t == 0)
    def _init():
        h_scr[...] = jnp.zeros_like(h_scr)
        c_scr[...] = jnp.zeros_like(c_scr)

    x_t = x_ref[0]          # (B, A)
    h = h_scr[...]          # (B, H)
    c = c_scr[...]          # (B, H)

    def gate(idx):
        return (jnp.dot(x_t, wih_ref[idx], preferred_element_type=jnp.float32)
                + jnp.dot(h, whh_ref[idx], preferred_element_type=jnp.float32)
                + bg_ref[idx])

    # PyTorch gate order: i, f, g, o
    i_g = jax.nn.sigmoid(gate(0))
    f_g = jax.nn.sigmoid(gate(1))
    g_g = jnp.tanh(gate(2))
    o_g = jax.nn.sigmoid(gate(3))

    c_new = f_g * c + i_g * g_g
    h_new = o_g * jnp.tanh(c_new)
    c_scr[...] = c_new
    h_scr[...] = h_new

    y = jnp.dot(h_new, wout_ref[...], preferred_element_type=jnp.float32) + bout_ref[...]
    y_ref[0] = y.astype(y_ref.dtype)


def action_lstm_forward(actions, w_ih, w_hh, b_ih, b_hh, w_out, b_out):
    """Returns action_dist: (seq_len, batch, action_dims), the Categorical parameters."""
    S, B, A = actions.shape
    H = w_hh.shape[1]
    assert w_ih.shape == (4 * H, A)
    assert w_hh.shape == (4 * H, H)
    assert w_out.shape == (A, H)

    # --- one-time weight repack (wrapper-side, plain JAX): kill in-kernel transposes ---
    wih_g = jnp.transpose(w_ih.reshape(4, H, A), (0, 2, 1))   # (4, A, H)
    whh_g = jnp.transpose(w_hh.reshape(4, H, H), (0, 2, 1))   # (4, H, H)
    b_g = (b_ih + b_hh).reshape(4, 1, H)                      # (4, 1, H)
    wout_t = w_out.T                                          # (H, A)
    bout2d = b_out.reshape(1, A)                              # (1, A)

    y = pl.pallas_call(
        _action_lstm_kernel,
        out_shape=jax.ShapeDtypeStruct((S, B, A), jnp.float32),
        grid_spec=pltpu.PrefetchScalarGridSpec(
            num_scalar_prefetch=0,
            grid=(S,),
            in_specs=[
                pl.BlockSpec((1, B, A), lambda t: (t, 0, 0)),   # x_t streams per step
                pl.BlockSpec((4, A, H), lambda t: (0, 0, 0)),   # weights stay resident
                pl.BlockSpec((4, H, H), lambda t: (0, 0, 0)),
                pl.BlockSpec((4, 1, H), lambda t: (0, 0, 0)),
                pl.BlockSpec((H, A), lambda t: (0, 0)),
                pl.BlockSpec((1, A), lambda t: (0, 0)),
            ],
            out_specs=pl.BlockSpec((1, B, A), lambda t: (t, 0, 0)),
            scratch_shapes=[
                pltpu.VMEM((B, H), jnp.float32),   # h carry
                pltpu.VMEM((B, H), jnp.float32),   # c carry
            ],
        ),
        compiler_params=pltpu.CompilerParams(
            dimension_semantics=("arbitrary",),    # time axis is a recurrence
        ),
    )(actions, wih_g, whh_g, b_g, wout_t, bout2d)
    return y


def _lstm_reference(actions, w_ih, w_hh, b_ih, b_hh, w_out, b_out):
    """Pure-JAX reference matching PyTorch nn.LSTM (1 layer) + nn.Linear."""
    S, B, A = actions.shape
    H = w_hh.shape[1]
    h = jnp.zeros((B, H), jnp.float32)
    c = jnp.zeros((B, H), jnp.float32)
    ys = []
    for t in range(S):
        gates = actions[t] @ w_ih.T + b_ih + h @ w_hh.T + b_hh
        i = jax.nn.sigmoid(gates[:, 0:H])
        f = jax.nn.sigmoid(gates[:, H:2 * H])
        g = jnp.tanh(gates[:, 2 * H:3 * H])
        o = jax.nn.sigmoid(gates[:, 3 * H:4 * H])
        c = f * c + i * g
        h = o * jnp.tanh(c)
        ys.append(h @ w_out.T + b_out)
    return jnp.stack(ys, axis=0)


if __name__ == "__main__":
    # Small shapes consistent with the module (hidden_dims shrunk from 400 for the demo).
    action_dims = 4
    hidden_dims = 32
    seq_len = 8
    batch = 2

    key = jax.random.PRNGKey(0)
    k_x, k_wih, k_whh, k_bih, k_bhh, k_wo, k_bo = jax.random.split(key, 7)

    # actions: (seq_len, batch, action_dims) as expected by nn.LSTM (seq-major).
    actions = jax.random.normal(k_x, (seq_len, batch, action_dims), dtype=jnp.float32)

    # PyTorch default init: U(-1/sqrt(hidden), 1/sqrt(hidden)) for LSTM params,
    # U(-1/sqrt(fan_in), 1/sqrt(fan_in)) for the Linear.
    bound = 1.0 / math.sqrt(hidden_dims)
    w_ih = jax.random.uniform(k_wih, (4 * hidden_dims, action_dims),
                              minval=-bound, maxval=bound, dtype=jnp.float32)
    w_hh = jax.random.uniform(k_whh, (4 * hidden_dims, hidden_dims),
                              minval=-bound, maxval=bound, dtype=jnp.float32)
    b_ih = jax.random.uniform(k_bih, (4 * hidden_dims,),
                              minval=-bound, maxval=bound, dtype=jnp.float32)
    b_hh = jax.random.uniform(k_bhh, (4 * hidden_dims,),
                              minval=-bound, maxval=bound, dtype=jnp.float32)
    w_out = jax.random.uniform(k_wo, (action_dims, hidden_dims),
                               minval=-bound, maxval=bound, dtype=jnp.float32)
    b_out = jax.random.uniform(k_bo, (action_dims,),
                               minval=-bound, maxval=bound, dtype=jnp.float32)

    action_dist = action_lstm_forward(actions, w_ih, w_hh, b_ih, b_hh, w_out, b_out)
    action_dist = jax.block_until_ready(action_dist)

    ref = _lstm_reference(actions, w_ih, w_hh, b_ih, b_hh, w_out, b_out)
    ref = jax.block_until_ready(ref)

    assert action_dist.shape == (seq_len, batch, action_dims)
    assert np.allclose(np.asarray(action_dist), np.asarray(ref), atol=1e-4, rtol=1e-4)

    print("KERNEL_OK")
</pallas_src>

<mosaic_0001>
module attributes {stable_mosaic.version = 11 : i64} {
  func.func @_action_lstm_kernel(%arg0: i32, %arg1: memref<1x2x4xf32, #tpu.memory_space<vmem>>, %arg2: memref<4x4x32xf32, #tpu.memory_space<vmem>>, %arg3: memref<4x32x32xf32, #tpu.memory_space<vmem>>, %arg4: memref<4x1x32xf32, #tpu.memory_space<vmem>>, %arg5: memref<32x4xf32, #tpu.memory_space<vmem>>, %arg6: memref<1x4xf32, #tpu.memory_space<vmem>>, %arg7: memref<1x2x4xf32, #tpu.memory_space<vmem>>, %arg8: memref<2x32xf32, #tpu.memory_space<vmem>>, %arg9: memref<2x32xf32, #tpu.memory_space<vmem>>) attributes {dimension_semantics = [#tpu.dimension_semantics<arbitrary>], iteration_bounds = array<i64: 8>, scalar_prefetch = 0 : i64, scratch_operands = 2 : i64, tpu.core_type = #tpu.core_type<tc>, window_params = [{transform_indices = @transform_0, window_bounds = array<i64: 1, 2, 4>}, {pipeline_mode = #tpu.pipeline_mode<synchronous>, transform_indices = @transform_1, window_bounds = array<i64: 4, 4, 32>}, {pipeline_mode = #tpu.pipeline_mode<synchronous>, transform_indices = @transform_2, window_bounds = array<i64: 4, 32, 32>}, {pipeline_mode = #tpu.pipeline_mode<synchronous>, transform_indices = @transform_3, window_bounds = array<i64: 4, 1, 32>}, {pipeline_mode = #tpu.pipeline_mode<synchronous>, transform_indices = @transform_4, window_bounds = array<i64: 32, 4>}, {pipeline_mode = #tpu.pipeline_mode<synchronous>, transform_indices = @transform_5, window_bounds = array<i64: 1, 4>}, {transform_indices = @transform_6, window_bounds = array<i64: 1, 2, 4>}]} {
    %c0_i32 = arith.constant 0 : i32
    %0 = arith.cmpi eq, %arg0, %c0_i32 : i32
    %1 = arith.extui %0 : i1 to i32
    %c0_i32_0 = arith.constant 0 : i32
    %2 = arith.cmpi ne, %1, %c0_i32_0 : i32
    scf.if %2 {
      %cst_62 = arith.constant 0.000000e+00 : f32
      %82 = vector.broadcast %cst_62 : f32 to vector<2x32xf32>
      %c0_63 = arith.constant 0 : index
      %c0_64 = arith.constant 0 : index
      %83 = vector.load %arg8[%c0_63, %c0_64] : memref<2x32xf32, #tpu.memory_space<vmem>>, vector<2x32xf32>
      tpu.vector_store %arg8[%c0_63, %c0_64], %82 {strides = array<i32>} : memref<2x32xf32, #tpu.memory_space<vmem>>, vector<2x32xf32>,
      %cst_65 = arith.constant 0.000000e+00 : f32
      %84 = vector.broadcast %cst_65 : f32 to vector<2x32xf32>
      %c0_66 = arith.constant 0 : index
      %c0_67 = arith.constant 0 : index
      %85 = vector.load %arg9[%c0_66, %c0_67] : memref<2x32xf32, #tpu.memory_space<vmem>>, vector<2x32xf32>
      tpu.vector_store %arg9[%c0_66, %c0_67], %84 {strides = array<i32>} : memref<2x32xf32, #tpu.memory_space<vmem>>, vector<2x32xf32>,
    } else {
    }
    %c0 = arith.constant 0 : index
    %c0_1 = arith.constant 0 : index
    %c0_2 = arith.constant 0 : index
    %3 = vector.load %arg1[%c0, %c0_1, %c0_2] : memref<1x2x4xf32, #tpu.memory_space<vmem>>, vector<1x2x4xf32>
    %4 = vector.shape_cast %3 : vector<1x2x4xf32> to vector<2x4xf32>
    %c0_3 = arith.constant 0 : index
    %c0_4 = arith.constant 0 : index
    %5 = vector.load %arg8[%c0_3, %c0_4] : memref<2x32xf32, #tpu.memory_space<vmem>>, vector<2x32xf32>
    %c0_5 = arith.constant 0 : index
    %c0_6 = arith.constant 0 : index
    %6 = vector.load %arg9[%c0_5, %c0_6] : memref<2x32xf32, #tpu.memory_space<vmem>>, vector<2x32xf32>
    %c0_7 = arith.constant 0 : index
    %c0_8 = arith.constant 0 : index
    %c0_9 = arith.constant 0 : index
    %7 = vector.load %arg2[%c0_7, %c0_8, %c0_9] : memref<4x4x32xf32, #tpu.memory_space<vmem>>, vector<1x4x32xf32>
    %8 = vector.shape_cast %7 : vector<1x4x32xf32> to vector<4x32xf32>
    %cst = arith.constant dense<0.000000e+00> : vector<2x32xf32>
    %9 = tpu.matmul %4, %8, %cst {dimension_numbers = #tpu.dot_dimension_numbers<[1], [0], [0], [1], [0, 0, 1, 1], [], []>} : vector<2x4xf32>, vector<4x32xf32>, vector<2x32xf32> -> vector<2x32xf32>
    %c0_10 = arith.constant 0 : index
    %c0_11 = arith.constant 0 : index
    %c0_12 = arith.constant 0 : index
    %10 = vector.load %arg3[%c0_10, %c0_11, %c0_12] : memref<4x32x32xf32, #tpu.memory_space<vmem>>, vector<1x32x32xf32>
    %11 = vector.shape_cast %10 : vector<1x32x32xf32> to vector<32x32xf32>
    %cst_13 = arith.constant dense<0.000000e+00> : vector<2x32xf32>
    %12 = tpu.matmul %5, %11, %cst_13 {dimension_numbers = #tpu.dot_dimension_numbers<[1], [0], [0], [1], [0, 0, 1, 1], [], []>} : vector<2x32xf32>, vector<32x32xf32>, vector<2x32xf32> -> vector<2x32xf32>
    %13 = arith.addf %9, %12 : vector<2x32xf32>
    %c0_14 = arith.constant 0 : index
    %c0_15 = arith.constant 0 : index
    %c0_16 = arith.constant 0 : index
    %14 = vector.load %arg4[%c0_14, %c0_15, %c0_16] : memref<4x1x32xf32, #tpu.memory_space<vmem>>, vector<1x1x32xf32>
    %15 = vector.shape_cast %14 : vector<1x1x32xf32> to vector<1x32xf32>
    %16 = vector.broadcast %15 : vector<1x32xf32> to vector<2x32xf32>
    %17 = arith.addf %13, %16 : vector<2x32xf32>
    %18 = arith.negf %17 : vector<2x32xf32>
    %19 = math.exp %18 : vector<2x32xf32>
    %cst_17 = arith.constant 1.000000e+00 : f32
    %20 = vector.broadcast %cst_17 : f32 to vector<2x32xf32>
    %21 = arith.addf %20, %19 : vector<2x32xf32>
    %22 = arith.divf %20, %21 : vector<2x32xf32>
    %c1 = arith.constant 1 : index
    %c0_18 = arith.constant 0 : index
    %c0_19 = arith.constant 0 : index
    %23 = vector.load %arg2[%c1, %c0_18, %c0_19] : memref<4x4x32xf32, #tpu.memory_space<vmem>>, vector<1x4x32xf32>
    %24 = vector.shape_cast %23 : vector<1x4x32xf32> to vector<4x32xf32>
    %cst_20 = arith.constant dense<0.000000e+00> : vector<2x32xf32>
    %25 = tpu.matmul %4, %24, %cst_20 {dimension_numbers = #tpu.dot_dimension_numbers<[1], [0], [0], [1], [0, 0, 1, 1], [], []>} : vector<2x4xf32>, vector<4x32xf32>, vector<2x32xf32> -> vector<2x32xf32>
    %c1_21 = arith.constant 1 : index
    %c0_22 = arith.constant 0 : index
    %c0_23 = arith.constant 0 : index
    %26 = vector.load %arg3[%c1_21, %c0_22, %c0_23] : memref<4x32x32xf32, #tpu.memory_space<vmem>>, vector<1x32x32xf32>
    %27 = vector.shape_cast %26 : vector<1x32x32xf32> to vector<32x32xf32>
    %cst_24 = arith.constant dense<0.000000e+00> : vector<2x32xf32>
    %28 = tpu.matmul %5, %27, %cst_24 {dimension_numbers = #tpu.dot_dimension_numbers<[1], [0], [0], [1], [0, 0, 1, 1], [], []>} : vector<2x32xf32>, vector<32x32xf32>, vector<2x32xf32> -> vector<2x32xf32>
    %29 = arith.addf %25, %28 : vector<2x32xf32>
    %c1_25 = arith.constant 1 : index
    %c0_26 = arith.constant 0 : index
    %c0_27 = arith.constant 0 : index
    %30 = vector.load %arg4[%c1_25, %c0_26, %c0_27] : memref<4x1x32xf32, #tpu.memory_space<vmem>>, vector<1x1x32xf32>
    %31 = vector.shape_cast %30 : vector<1x1x32xf32> to vector<1x32xf32>
    %32 = vector.broadcast %31 : vector<1x32xf32> to vector<2x32xf32>
    %33 = arith.addf %29, %32 : vector<2x32xf32>
    %34 = arith.negf %33 : vector<2x32xf32>
    %35 = math.exp %34 : vector<2x32xf32>
    %cst_28 = arith.constant 1.000000e+00 : f32
    %36 = vector.broadcast %cst_28 : f32 to vector<2x32xf32>
    %37 = arith.addf %36, %35 : vector<2x32xf32>
    %38 = arith.divf %36, %37 : vector<2x32xf32>
    %c2 = arith.constant 2 : index
    %c0_29 = arith.constant 0 : index
    %c0_30 = arith.constant 0 : index
    %39 = vector.load %arg2[%c2, %c0_29, %c0_30] : memref<4x4x32xf32, #tpu.memory_space<vmem>>, vector<1x4x32xf32>
    %40 = vector.shape_cast %39 : vector<1x4x32xf32> to vector<4x32xf32>
    %cst_31 = arith.constant dense<0.000000e+00> : vector<2x32xf32>
    %41 = tpu.matmul %4, %40, %cst_31 {dimension_numbers = #tpu.dot_dimension_numbers<[1], [0], [0], [1], [0, 0, 1, 1], [], []>} : vector<2x4xf32>, vector<4x32xf32>, vector<2x32xf32> -> vector<2x32xf32>
    %c2_32 = arith.constant 2 : index
    %c0_33 = arith.constant 0 : index
    %c0_34 = arith.constant 0 : index
    %42 = vector.load %arg3[%c2_32, %c0_33, %c0_34] : memref<4x32x32xf32, #tpu.memory_space<vmem>>, vector<1x32x32xf32>
    %43 = vector.shape_cast %42 : vector<1x32x32xf32> to vector<32x32xf32>
    %cst_35 = arith.constant dense<0.000000e+00> : vector<2x32xf32>
    %44 = tpu.matmul %5, %43, %cst_35 {dimension_numbers = #tpu.dot_dimension_numbers<[1], [0], [0], [1], [0, 0, 1, 1], [], []>} : vector<2x32xf32>, vector<32x32xf32>, vector<2x32xf32> -> vector<2x32xf32>
    %45 = arith.addf %41, %44 : vector<2x32xf32>
    %c2_36 = arith.constant 2 : index
    %c0_37 = arith.constant 0 : index
    %c0_38 = arith.constant 0 : index
    %46 = vector.load %arg4[%c2_36, %c0_37, %c0_38] : memref<4x1x32xf32, #tpu.memory_space<vmem>>, vector<1x1x32xf32>
    %47 = vector.shape_cast %46 : vector<1x1x32xf32> to vector<1x32xf32>
    %48 = vector.broadcast %47 : vector<1x32xf32> to vector<2x32xf32>
    %49 = arith.addf %45, %48 : vector<2x32xf32>
    %50 = math.tanh %49 : vector<2x32xf32>
    %c3 = arith.constant 3 : index
    %c0_39 = arith.constant 0 : index
    %c0_40 = arith.constant 0 : index
    %51 = vector.load %arg2[%c3, %c0_39, %c0_40] : memref<4x4x32xf32, #tpu.memory_space<vmem>>, vector<1x4x32xf32>
    %52 = vector.shape_cast %51 : vector<1x4x32xf32> to vector<4x32xf32>
    %cst_41 = arith.constant dense<0.000000e+00> : vector<2x32xf32>
    %53 = tpu.matmul %4, %52, %cst_41 {dimension_numbers = #tpu.dot_dimension_numbers<[1], [0], [0], [1], [0, 0, 1, 1], [], []>} : vector<2x4xf32>, vector<4x32xf32>, vector<2x32xf32> -> vector<2x32xf32>
    %c3_42 = arith.constant 3 : index
    %c0_43 = arith.constant 0 : index
    %c0_44 = arith.constant 0 : index
    %54 = vector.load %arg3[%c3_42, %c0_43, %c0_44] : memref<4x32x32xf32, #tpu.memory_space<vmem>>, vector<1x32x32xf32>
    %55 = vector.shape_cast %54 : vector<1x32x32xf32> to vector<32x32xf32>
    %cst_45 = arith.constant dense<0.000000e+00> : vector<2x32xf32>
    %56 = tpu.matmul %5, %55, %cst_45 {dimension_numbers = #tpu.dot_dimension_numbers<[1], [0], [0], [1], [0, 0, 1, 1], [], []>} : vector<2x32xf32>, vector<32x32xf32>, vector<2x32xf32> -> vector<2x32xf32>
    %57 = arith.addf %53, %56 : vector<2x32xf32>
    %c3_46 = arith.constant 3 : index
    %c0_47 = arith.constant 0 : index
    %c0_48 = arith.constant 0 : index
    %58 = vector.load %arg4[%c3_46, %c0_47, %c0_48] : memref<4x1x32xf32, #tpu.memory_space<vmem>>, vector<1x1x32xf32>
    %59 = vector.shape_cast %58 : vector<1x1x32xf32> to vector<1x32xf32>
    %60 = vector.broadcast %59 : vector<1x32xf32> to vector<2x32xf32>
    %61 = arith.addf %57, %60 : vector<2x32xf32>
    %62 = arith.negf %61 : vector<2x32xf32>
    %63 = math.exp %62 : vector<2x32xf32>
    %cst_49 = arith.constant 1.000000e+00 : f32
    %64 = vector.broadcast %cst_49 : f32 to vector<2x32xf32>
    %65 = arith.addf %64, %63 : vector<2x32xf32>
    %66 = arith.divf %64, %65 : vector<2x32xf32>
    %67 = arith.mulf %38, %6 : vector<2x32xf32>
    %68 = arith.mulf %22, %50 : vector<2x32xf32>
    %69 = arith.addf %67, %68 : vector<2x32xf32>
    %70 = math.tanh %69 : vector<2x32xf32>
    %71 = arith.mulf %66, %70 : vector<2x32xf32>
    %c0_50 = arith.constant 0 : index
    %c0_51 = arith.constant 0 : index
    %72 = vector.load %arg9[%c0_50, %c0_51] : memref<2x32xf32, #tpu.memory_space<vmem>>, vector<2x32xf32>
    tpu.vector_store %arg9[%c0_50, %c0_51], %69 {strides = array<i32>} : memref<2x32xf32, #tpu.memory_space<vmem>>, vector<2x32xf32>,
    %c0_52 = arith.constant 0 : index
    %c0_53 = arith.constant 0 : index
    %73 = vector.load %arg8[%c0_52, %c0_53] : memref<2x32xf32, #tpu.memory_space<vmem>>, vector<2x32xf32>
    tpu.vector_store %arg8[%c0_52, %c0_53], %71 {strides = array<i32>} : memref<2x32xf32, #tpu.memory_space<vmem>>, vector<2x32xf32>,
    %c0_54 = arith.constant 0 : index
    %c0_55 = arith.constant 0 : index
    %74 = vector.load %arg5[%c0_54, %c0_55] : memref<32x4xf32, #tpu.memory_space<vmem>>, vector<32x4xf32>
    %cst_56 = arith.constant dense<0.000000e+00> : vector<2x4xf32>
    %75 = tpu.matmul %71, %74, %cst_56 {dimension_numbers = #tpu.dot_dimension_numbers<[1], [0], [0], [1], [0, 0, 1, 1], [], []>} : vector<2x32xf32>, vector<32x4xf32>, vector<2x4xf32> -> vector<2x4xf32>
    %c0_57 = arith.constant 0 : index
    %c0_58 = arith.constant 0 : index
    %76 = vector.load %arg6[%c0_57, %c0_58] : memref<1x4xf32, #tpu.memory_space<vmem>>, vector<1x4xf32>
    %77 = vector.broadcast %76 : vector<1x4xf32> to vector<2x4xf32>
    %78 = arith.addf %75, %77 : vector<2x4xf32>
    %c0_59 = arith.constant 0 : index
    %c0_60 = arith.constant 0 : index
    %c0_61 = arith.constant 0 : index
    %79 = vector.load %arg7[%c0_59, %c0_60, %c0_61] : memref<1x2x4xf32, #tpu.memory_space<vmem>>, vector<1x2x4xf32>
    %80 = vector.shape_cast %79 : vector<1x2x4xf32> to vector<2x4xf32>
    %81 = vector.shape_cast %78 : vector<2x4xf32> to vector<1x2x4xf32>
    tpu.vector_store %arg7[%c0_59, %c0_60, %c0_61], %81 {strides = array<i32>} : memref<1x2x4xf32, #tpu.memory_space<vmem>>, vector<1x2x4xf32>,
    return
  }
  func.func @transform_0(%arg0: i32) -> (i32, i32, i32) {
    %c0_i32 = arith.constant 0 : i32
    %c0_i32_0 = arith.constant 0 : i32
    %c0_i32_1 = arith.constant 0 : i32
    return %arg0, %c0_i32, %c0_i32_0 : i32, i32, i32
  }
  func.func @transform_1(%arg0: i32) -> (i32, i32, i32) {
    %c0_i32 = arith.constant 0 : i32
    %c0_i32_0 = arith.constant 0 : i32
    %c0_i32_1 = arith.constant 0 : i32
    %c0_i32_2 = arith.constant 0 : i32
    return %c0_i32, %c0_i32_0, %c0_i32_1 : i32, i32, i32
  }
  func.func @transform_2(%arg0: i32) -> (i32, i32, i32) {
    %c0_i32 = arith.constant 0 : i32
    %c0_i32_0 = arith.constant 0 : i32
    %c0_i32_1 = arith.constant 0 : i32
    %c0_i32_2 = arith.constant 0 : i32
    return %c0_i32, %c0_i32_0, %c0_i32_1 : i32, i32, i32
  }
  func.func @transform_3(%arg0: i32) -> (i32, i32, i32) {
    %c0_i32 = arith.constant 0 : i32
    %c0_i32_0 = arith.constant 0 : i32
    %c0_i32_1 = arith.constant 0 : i32
    %c0_i32_2 = arith.constant 0 : i32
    return %c0_i32, %c0_i32_0, %c0_i32_1 : i32, i32, i32
  }
  func.func @transform_4(%arg0: i32) -> (i32, i32) {
    %c0_i32 = arith.constant 0 : i32
    %c0_i32_0 = arith.constant 0 : i32
    %c0_i32_1 = arith.constant 0 : i32
    return %c0_i32, %c0_i32_0 : i32, i32
  }
  func.func @transform_5(%arg0: i32) -> (i32, i32) {
    %c0_i32 = arith.constant 0 : i32
    %c0_i32_0 = arith.constant 0 : i32
    %c0_i32_1 = arith.constant 0 : i32
    return %c0_i32, %c0_i32_0 : i32, i32
  }
  func.func @transform_6(%arg0: i32) -> (i32, i32, i32) {
    %c0_i32 = arith.constant 0 : i32
    %c0_i32_0 = arith.constant 0 : i32
    %c0_i32_1 = arith.constant 0 : i32
    return %arg0, %c0_i32, %c0_i32_0 : i32, i32, i32
  }
}

</mosaic_0001>

<llo_original>
// kernel: tpu_custom_call.1
$region0: #{tpu_custom_call.1}
  #allocation0 [shape = 'u32[]', space=smem, size = 0x4, offset = 0x4, fixed_abs, tag = 'smem constant byte address 0x4 - core index']
  #allocation1 [shape = 'u32[72,128]{1,0:T(1,128)}', space=vmem, size = 0x9000, scoped, tag = 'internal scratch']
  #allocation2 [shape = 'f32[2,32]{1,0:T(2,128)}', space=vmem, size = 0x400, scoped, tag = 'scratch operand']
  #allocation3 [shape = 'f32[2,32]{1,0:T(2,128)}', space=vmem, size = 0x400, scoped, tag = 'scratch operand']
  %s0 = inlined_call_operand.vmem [shape: f32[8,2,4], index: 0, kind: input, shape index: {}]
  %s1 = inlined_call_operand.vmem [shape: f32[4,4,32], index: 1, kind: input, shape index: {}]
  %s2 = inlined_call_operand.hbm [shape: f32[4,32,32], index: 2, kind: input, shape index: {}]
  %s3 = inlined_call_operand.vmem [shape: f32[4,1,32], index: 3, kind: input, shape index: {}]
  %s4 = inlined_call_operand.vmem [shape: f32[32,4], index: 4, kind: input, shape index: {}]
  %s5 = inlined_call_operand.vmem [shape: f32[1,4], index: 5, kind: input, shape index: {}]
  %s6 = inlined_call_operand.vmem [shape: f32[8,2,4], index: 6, kind: output, shape index: {}]
  %s7 = sld [smem:[#allocation0]]
  $region65: #{tpu_custom_call.1} parent=0
    _
  %s9 = ssub.s32 1, %s7
  %s10 = scalar_select 0, %s9, %s7
  $region1: #{tpu_custom_call.1} parent=0
    #allocation4 [shape = 'u8[65536]{0}', space=vmem, size = 0x10000, scoped, tag = 'input window, operand 2, single buffered']
    #allocation5 [shape = 's32[2]{0}', space=sflag, size = 0x8, scoped, tag = 'scoped memory for tpu_custom_call.1']
    %11 = vsyncpa [#allocation5], 0
    loop: start=0, step=1, limit=10
    $region2: #{tpu_custom_call.1} parent=1 // loop_pre_header
      _
    $region3: #{tpu_custom_call.1} parent=1 // loop_header
      %s13 = sphi 0, %s17
      %p14 = scmp.ge.s32.totalorder %s13, 10
      %s23 = sphi 0, %s25
      %s26 = sphi 0, %s23
      %s27 = sphi 0, %s26
      %s43 = sphi 0, %s27
      %s47 = sphi 0, %s47
      %s49 = sphi 0, %s47
      %s50 = sphi 0, %s49
      %s64 = sphi 0, %s50
      %s68 = sphi 0, %s68
      %s70 = sphi 0, %s68
      %s71 = sphi 0, %s70
      %s85 = sphi 0, %s71
      %s89 = sphi 0, %s89
      %s91 = sphi 0, %s89
      %s92 = sphi 0, %s91
      %s106 = sphi 0, %s92
      %s110 = sphi 0, %s110
      %s112 = sphi 0, %s110
      %s113 = sphi 0, %s112
      %s127 = sphi 0, %s113
      %s131 = sphi 0, %s131
      %s133 = sphi 0, %s131
      %s134 = sphi 0, %s133
      %s148 = sphi 0, %s134
      %s154 = sphi 0, %s156
      %s157 = sphi 0, %s154
      %s158 = sphi 0, %s157
      %s174 = sphi 0, %s158
    $region4: #{tpu_custom_call.1} parent=1 // loop_header_branch
      %16 = sbr.rel (%p14) target = $region8
    $region5: #{tpu_custom_call.1} parent=1 // loop_body
      %s18 = ssub.s32 %s13, 1
      %s19 = ssub.s32 %s13, 2
      %s20 = sadd.s32 %s13, 1
      %s21 = ssub.s32 %s13, %s20
      %p22 = scmp.eq.s32.totalorder %s21, 0
      %s24 = sadd.s32 %s23, 1
      %s25 = scalar_select %p22, %s23, %s24
      %p28 = pneg %p22
      %p29 = scmp.eq.s32.totalorder %s13, 7
      %p30 = por %p28, %p29
      %p31 = scmp.ne.s32.totalorder %s23, %s26
      %p32 = scmp.eq.s32.totalorder %s13, 0
      %p33 = por %p31, %p32
      %p34 = scmp.ne.s32.totalorder %s23, %s26
      %p35 = scmp.eq.s32.totalorder %s18, 7
      %p36 = por %p34, %p35
      %p37 = scmp.ne.s32.totalorder %s26, %s27
      %p38 = scmp.eq.s32.totalorder %s18, 0
      %p39 = por %p37, %p38
      %p40 = scmp.ne.s32.totalorder %s26, %s27
      %p41 = scmp.eq.s32.totalorder %s19, 7
      %p42 = por %p40, %p41
      %p44 = scmp.ne.s32.totalorder %s27, %s43
      %p45 = scmp.eq.s32.totalorder %s19, 0
      %p46 = por %p44, %p45
      %s48 = sadd.s32 %s47, 1
      %p51 = scmp.eq.s32.totalorder %s13, 7
      %p52 = scmp.ne.s32.totalorder %s47, %s49
      %p53 = scmp.eq.s32.totalorder %s13, 0
      %p54 = por %p52, %p53
      %p55 = scmp.ne.s32.totalorder %s47, %s49
      %p56 = scmp.eq.s32.totalorder %s18, 7
      %p57 = por %p55, %p56
      %p58 = scmp.ne.s32.totalorder %s49, %s50
      %p59 = scmp.eq.s32.totalorder %s18, 0
      %p60 = por %p58, %p59
      %p61 = scmp.ne.s32.totalorder %s49, %s50
      %p62 = scmp.eq.s32.totalorder %s19, 7
      %p63 = por %p61, %p62
      %p65 = scmp.ne.s32.totalorder %s50, %s64
      %p66 = scmp.eq.s32.totalorder %s19, 0
      %p67 = por %p65, %p66
      %s69 = sadd.s32 %s68, 1
      %p72 = scmp.eq.s32.totalorder %s13, 7
      %p73 = scmp.ne.s32.totalorder %s68, %s70
      %p74 = scmp.eq.s32.totalorder %s13, 0
      %p75 = por %p73, %p74
      %p76 = scmp.ne.s32.totalorder %s68, %s70
      %p77 = scmp.eq.s32.totalorder %s18, 7
      %p78 = por %p76, %p77
      %p79 = scmp.ne.s32.totalorder %s70, %s71
      %p80 = scmp.eq.s32.totalorder %s18, 0
      %p81 = por %p79, %p80
      %p82 = scmp.ne.s32.totalorder %s70, %s71
      %p83 = scmp.eq.s32.totalorder %s19, 7
      %p84 = por %p82, %p83
      %p86 = scmp.ne.s32.totalorder %s71, %s85
      %p87 = scmp.eq.s32.totalorder %s19, 0
      %p88 = por %p86, %p87
      %s90 = sadd.s32 %s89, 1
      %p93 = scmp.eq.s32.totalorder %s13, 7
      %p94 = scmp.ne.s32.totalorder %s89, %s91
      %p95 = scmp.eq.s32.totalorder %s13, 0
      %p96 = por %p94, %p95
      %p97 = scmp.ne.s32.totalorder %s89, %s91
      %p98 = scmp.eq.s32.totalorder %s18, 7
      %p99 = por %p97, %p98
      %p100 = scmp.ne.s32.totalorder %s91, %s92
      %p101 = scmp.eq.s32.totalorder %s18, 0
      %p102 = por %p100, %p101
      %p103 = scmp.ne.s32.totalorder %s91, %s92
      %p104 = scmp.eq.s32.totalorder %s19, 7
      %p105 = por %p103, %p104
      %p107 = scmp.ne.s32.totalorder %s92, %s106
      %p108 = scmp.eq.s32.totalorder %s19, 0
      %p109 = por %p107, %p108
      %s111 = sadd.s32 %s110, 1
      %p114 = scmp.eq.s32.totalorder %s13, 7
      %p115 = scmp.ne.s32.totalorder %s110, %s112
      %p116 = scmp.eq.s32.totalorder %s13, 0
      %p117 = por %p115, %p116
      %p118 = scmp.ne.s32.totalorder %s110, %s112
      %p119 = scmp.eq.s32.totalorder %s18, 7
      %p120 = por %p118, %p119
      %p121 = scmp.ne.s32.totalorder %s112, %s113
      %p122 = scmp.eq.s32.totalorder %s18, 0
      %p123 = por %p121, %p122
      %p124 = scmp.ne.s32.totalorder %s112, %s113
      %p125 = scmp.eq.s32.totalorder %s19, 7
      %p126 = por %p124, %p125
      %p128 = scmp.ne.s32.totalorder %s113, %s127
      %p129 = scmp.eq.s32.totalorder %s19, 0
      %p130 = por %p128, %p129
      %s132 = sadd.s32 %s131, 1
      %p135 = scmp.eq.s32.totalorder %s13, 7
      %p136 = scmp.ne.s32.totalorder %s131, %s133
      %p137 = scmp.eq.s32.totalorder %s13, 0
      %p138 = por %p136, %p137
      %p139 = scmp.ne.s32.totalorder %s131, %s133
      %p140 = scmp.eq.s32.totalorder %s18, 7
      %p141 = por %p139, %p140
      %p142 = scmp.ne.s32.totalorder %s133, %s134
      %p143 = scmp.eq.s32.totalorder %s18, 0
      %p144 = por %p142, %p143
      %p145 = scmp.ne.s32.totalorder %s133, %s134
      %p146 = scmp.eq.s32.totalorder %s19, 7
      %p147 = por %p145, %p146
      %p149 = scmp.ne.s32.totalorder %s134, %s148
      %p150 = scmp.eq.s32.totalorder %s19, 0
      %p151 = por %p149, %p150
      %s152 = ssub.s32 %s13, %s20
      %p153 = scmp.eq.s32.totalorder %s152, 0
      %s155 = sadd.s32 %s154, 1
      %s156 = scalar_select %p153, %s154, %s155
      %p159 = pneg %p153
      %p160 = scmp.eq.s32.totalorder %s13, 7
      %p161 = por %p159, %p160
      %p162 = scmp.ne.s32.totalorder %s154, %s157
      %p163 = scmp.eq.s32.totalorder %s13, 0
      %p164 = por %p162, %p163
      %p165 = scmp.ne.s32.totalorder %s154, %s157
      %p166 = scmp.eq.s32.totalorder %s18, 7
      %p167 = por %p165, %p166
      %p168 = scmp.ne.s32.totalorder %s157, %s158
      %p169 = scmp.eq.s32.totalorder %s18, 0
      %p170 = por %p168, %p169
      %p171 = scmp.ne.s32.totalorder %s157, %s158
      %p172 = scmp.eq.s32.totalorder %s19, 7
      %p173 = por %p171, %p172
      %p175 = scmp.ne.s32.totalorder %s158, %s174
      %p176 = scmp.eq.s32.totalorder %s19, 0
      %p177 = por %p175, %p176
      %p178 = scmp.le.s32.totalorder 1, %s13
      %p179 = scmp.lt.s32.totalorder %s13, 9
      %p180 = pnand %p178, %p179
      %p181 = pneg %p180
      // Predicated region
      $region9: #{tpu_custom_call.1} parent=5 // pred_check
        _
      $region10: #{tpu_custom_call.1} parent=5 // pred_check_branch
        %183 = sbr.rel (%p180) target = $region12
      $region11: #{tpu_custom_call.1} parent=5 // pred_region
        %s184 = ssub.s32 %s13, 1
        // Predicated region
        $region13: #{tpu_custom_call.1} parent=11 // pred_check
          %p185 = pneg %p60
        $region14: #{tpu_custom_call.1} parent=11 // pred_check_branch
          %187 = sbr.rel (%p185) target = $region16
        $region15: #{tpu_custom_call.1} parent=11 // pred_region
          _
        $region16: #{tpu_custom_call.1} parent=11 // pred_fallthru
          _
        // Predicated region
        $region17: #{tpu_custom_call.1} parent=11 // pred_check
          %p188 = pneg %p81
        $region18: #{tpu_custom_call.1} parent=11 // pred_check_branch
          %190 = sbr.rel (%p188) target = $region20
        $region19: #{tpu_custom_call.1} parent=11 // pred_region
          %192 = vsyncadd [#allocation5], 0
          %s193 = sshll.u32 %s2, 4
          %s194 = int_to_ptr.hbm [resolvable:$true] %s193
          %s195 = sshll.u32 [#allocation4], 4
          %s196 = int_to_ptr.vmem [resolvable:$true] %s195
          %201 = dma.hbm_to_vmem [thread:$0]  %s194, 2048, %s196, [#allocation5], 128, 128, 8
        $region20: #{tpu_custom_call.1} parent=11 // pred_fallthru
          _
        // Predicated region
        $region21: #{tpu_custom_call.1} parent=11 // pred_check
          %p202 = pneg %p102
        $region22: #{tpu_custom_call.1} parent=11 // pred_check_branch
          %204 = sbr.rel (%p202) target = $region24
        $region23: #{tpu_custom_call.1} parent=11 // pred_region
          _
        $region24: #{tpu_custom_call.1} parent=11 // pred_fallthru
          _
        // Predicated region
        $region25: #{tpu_custom_call.1} parent=11 // pred_check
          %p205 = pneg %p123
        $region26: #{tpu_custom_call.1} parent=11 // pred_check_branch
          %207 = sbr.rel (%p205) target = $region28
        $region27: #{tpu_custom_call.1} parent=11 // pred_region
          _
        $region28: #{tpu_custom_call.1} parent=11 // pred_fallthru
          _
        // Predicated region
        $region29: #{tpu_custom_call.1} parent=11 // pred_check
          %p208 = pneg %p144
        $region30: #{tpu_custom_call.1} parent=11 // pred_check_branch
          %210 = sbr.rel (%p208) target = $region32
        $region31: #{tpu_custom_call.1} parent=11 // pred_region
          _
        $region32: #{tpu_custom_call.1} parent=11 // pred_fallthru
          _
      $region12: #{tpu_custom_call.1} parent=5 // pred_fallthru
        _
      %p211 = scmp.lt.s32.totalorder %s13, 8
      // Predicated region
      $region33: #{tpu_custom_call.1} parent=5 // pred_check
        %p212 = pneg %p211
      $region34: #{tpu_custom_call.1} parent=5 // pred_check_branch
        %214 = sbr.rel (%p212) target = $region36
      $region35: #{tpu_custom_call.1} parent=5 // pred_region
        // Predicated region
        $region37: #{tpu_custom_call.1} parent=35 // pred_check
          %p215 = pneg %p33
        $region38: #{tpu_custom_call.1} parent=35 // pred_check_branch
          %217 = sbr.rel (%p215) target = $region40
        $region39: #{tpu_custom_call.1} parent=35 // pred_region
          %p218 = scmp.lt.s32.totalorder %s13, 7
          %s219 = scalar_select %p218, %s13, 7
          %s220 = smul.addr %s219, 2
          %s221 = scalar_lea.vmem %s0, %s220
        $region40: #{tpu_custom_call.1} parent=35 // pred_fallthru
          _
      $region36: #{tpu_custom_call.1} parent=5 // pred_fallthru
        _
      %p222 = scmp.le.s32.totalorder 1, %s13
      %p223 = scmp.lt.s32.totalorder %s13, 9
      %p224 = pnand %p222, %p223
      %p225 = pneg %p224
      // Predicated region
      $region41: #{tpu_custom_call.1} parent=5 // pred_check
        _
      $region42: #{tpu_custom_call.1} parent=5 // pred_check_branch
        %227 = sbr.rel (%p224) target = $region44
      $region43: #{tpu_custom_call.1} parent=5 // pred_region
        %s228 = ssub.s32 %s13, 1
        // Predicated region
        $region45: #{tpu_custom_call.1} parent=43 // pred_check
          %p229 = pneg %p81
        $region46: #{tpu_custom_call.1} parent=43 // pred_check_branch
          %231 = sbr.rel (%p229) target = $region48
        $region47: #{tpu_custom_call.1} parent=43 // pred_region
          %233 = dma.done [#allocation5], 2048
        $region48: #{tpu_custom_call.1} parent=43 // pred_fallthru
          _
        %p234 = scmp.lt.s32.totalorder %s18, 7
        %s235 = scalar_select %p234, %s18, 7
        %s236 = smul.addr %s235, 2
        %s237 = scalar_lea.vmem %s0, %s236
        %p238 = pneg %p39
        %p239 = pneg %p36
        %p240 = pneg %p60
        %p241 = pneg %p57
        %p242 = pneg %p81
        %p243 = pneg %p78
        %p244 = pneg %p102
        %p245 = pneg %p99
        %p246 = pneg %p123
        %p247 = pneg %p120
        %p248 = pneg %p144
        %p249 = pneg %p141
        %p250 = pneg %p170
        %p251 = pneg %p167
        %p252 = scmp.lt.s32.totalorder %s18, 7
        %s253 = scalar_select %p252, %s18, 7
        %s254 = smul.addr %s253, 2
        %s255 = scalar_lea.vmem %s6, %s254
        %p256 = scmp.lt.s32.totalorder %s18, 7
        %s257 = scalar_select %p256, %s18, 7
        %s258 = smul.addr %s257, 2
        %s259 = scalar_lea.vmem %s0, %s258
        %p260 = scmp.lt.s32.totalorder %s18, 7
        %s261 = scalar_select %p260, %s18, 7
        %s262 = smul.addr %s261, 2
        %s263 = scalar_lea.vmem %s6, %s262
        %p264 = scmp.eq.s32.totalorder %s18, 0
        // Predicated region
        $region49: #{tpu_custom_call.1} parent=43 // pred_check
          %p265 = pneg %p264
        $region50: #{tpu_custom_call.1} parent=43 // pred_check_branch
          %267 = sbr.rel (%p265) target = $region52
        $region51: #{tpu_custom_call.1} parent=43 // pred_region
          %vm268 = vcmask 254976
          %269 = vst.msk [vmem:[#allocation2] sm:$0x3] %vm268, 0.0
          %270 = vst.msk [vmem:[#allocation3] sm:$0x3] %vm268, 0.0
        $region52: #{tpu_custom_call.1} parent=43 // pred_fallthru
          _
        %v271 = vld [vmem:[%s259] sm:$0x3]
        %v272 = vld [vmem:[#allocation2] sm:$0x3]
        %v273 = vld [vmem:[#allocation3] sm:$0x3]
        %v274 = vld [vmem:[%s1] sm:$0xf]
        %v275 = vld [vmem:[#allocation4] sm:$0xff]
        %v276 = vld [vmem:[#allocation4 + $0x8] sm:$0xff]
        %v277 = vld [vmem:[#allocation4 + $0x10] sm:$0xff]
        %v278 = vld [vmem:[#allocation4 + $0x18] sm:$0xff]
        %vm279 = vcmask 261120
        %v281 = vsel %vm279, %v272, 0
        %283 = vmatpush.msra.mxu0 0.0
        %284 = vmatpush.msra.mxu0 0.0
        %285 = vmatpush.msra.mxu0 0.0
        %286 = vmatpush.msra.mxu0 0.0
        %287 = vmatpush.msra.mxu0 0.0
        %288 = vmatpush.msra.mxu0 0.0
        %289 = vmatpush.msra.mxu0 0.0
        %290 = vmatpush.msra.mxu0 0.0
        %291 = vmatpush.msra.mxu0 0.0
        %292 = vmatpush.msra.mxu0 0.0
        %293 = vmatpush.msra.mxu0 0.0
        %294 = vmatpush.msra.mxu0 0.0
        %295 = vmatpush.msra.mxu0 %v278
        %296 = vmatpush.msra.mxu0 %v277
        %297 = vmatpush.msra.mxu0 %v276
        %298 = vmatpush.msra.mxu0 %v275
        %299 = vmatmul.f32.gmra.mxu0 %v281
        %v300 = vpop.f32.mrf.mxu0
        %v301 = vadd.f32 0.0, %v300
        %302 = vdwg.mxu0
        %vm303 = vcmask 31744
        %v305 = vsel %vm303, %v271, 0
        %vm307 = vcmask 1043456
        %v309 = vsel %vm307, %v274, 0
        %311 = vmatpush.msra.mxu0 0.0
        %312 = vmatpush.msra.mxu0 0.0
        %313 = vmatpush.msra.mxu0 0.0
        %314 = vmatpush.msra.mxu0 0.0
        %315 = vmatpush.msra.mxu0 0.0
        %316 = vmatpush.msra.mxu0 0.0
        %317 = vmatpush.msra.mxu0 0.0
        %318 = vmatpush.msra.mxu0 0.0
        %319 = vmatpush.msra.mxu0 0.0
        %320 = vmatpush.msra.mxu0 0.0
        %321 = vmatpush.msra.mxu0 0.0
        %322 = vmatpush.msra.mxu0 0.0
        %323 = vmatpush.msra.mxu0 0.0
        %324 = vmatpush.msra.mxu0 0.0
        %325 = vmatpush.msra.mxu0 0.0
        %326 = vmatpush.msra.mxu0 %v309
        %327 = vmatmul.f32.gmra.mxu0 %v305
        %v328 = vpop.f32.mrf.mxu0
        %v329 = vadd.f32 %v301, %v328
        %330 = vdwg.mxu0
        %v331 = vld [vmem:[%s3] sm:$0x1]
        %v333 = vperm.slane %v331, 0
        %v335 = vadd.f32 %v329, %v333
        %v336 = vxor.u32 %v335, 2147483648
        %v337 = vmul.f32 %v336, 1.442695
        %v338 = vpow.pop %v337
        %v339 = vadd.f32 %v338, 1.0
        %v340 = vrcp.pop %v339
        %v341 = vmul.f32 %v339, %v340
        %v342 = vsub.f32 1.0, %v341
        %v343 = vmul.f32 %v340, %v342
        %v344 = vadd.f32 %v340, %v343
        %vm345 = vweird.f32 %v339
        %vm346 = vweird.f32 %v340
        %vm347 = vmor %vm345, %vm346
        %v348 = vsel %vm347, %v340, %v344
        %v349 = vand.u32 2147483647, %v339
        %vm350 = vcmp.eq.f32.partialorder %v349, 8.507059e+37
        %v351 = vand.u32 %v339, 2147483648
        %v352 = vor.u32 1.1754944e-38, %v351
        %v353 = vsel %vm350, %v352, %v348
        %v354 = vmul.f32 1.0, %v353
        %s355 = scalar_lea.vmem %s1, 4
        %v356 = vld [vmem:[%s355] sm:$0xf]
        %s357 = scalar_lea.vmem [#allocation4], 32
        %v358 = vld [vmem:[%s357] sm:$0xff]
        %v359 = vld [vmem:[%s357 + $0x8] sm:$0xff]
        %v360 = vld [vmem:[%s357 + $0x10] sm:$0xff]
        %v361 = vld [vmem:[%s357 + $0x18] sm:$0xff]
        %362 = vmatpush.msra.mxu0 0.0
        %363 = vmatpush.msra.mxu0 0.0
        %364 = vmatpush.msra.mxu0 0.0
        %365 = vmatpush.msra.mxu0 0.0
        %366 = vmatpush.msra.mxu0 0.0
        %367 = vmatpush.msra.mxu0 0.0
        %368 = vmatpush.msra.mxu0 0.0
        %369 = vmatpush.msra.mxu0 0.0
        %370 = vmatpush.msra.mxu0 0.0
        %371 = vmatpush.msra.mxu0 0.0
        %372 = vmatpush.msra.mxu0 0.0
        %373 = vmatpush.msra.mxu0 0.0
        %374 = vmatpush.msra.mxu0 %v361
        %375 = vmatpush.msra.mxu0 %v360
        %376 = vmatpush.msra.mxu0 %v359
        %377 = vmatpush.msra.mxu0 %v358
        %378 = vmatmul.f32.gmra.mxu0 %v281
        %v379 = vpop.f32.mrf.mxu0
        %v380 = vadd.f32 0.0, %v379
        %381 = vdwg.mxu0
        %v383 = vsel %vm307, %v356, 0
        %385 = vmatpush.msra.mxu0 0.0
        %386 = vmatpush.msra.mxu0 0.0
        %387 = vmatpush.msra.mxu0 0.0
        %388 = vmatpush.msra.mxu0 0.0
        %389 = vmatpush.msra.mxu0 0.0
        %390 = vmatpush.msra.mxu0 0.0
        %391 = vmatpush.msra.mxu0 0.0
        %392 = vmatpush.msra.mxu0 0.0
        %393 = vmatpush.msra.mxu0 0.0
        %394 = vmatpush.msra.mxu0 0.0
        %395 = vmatpush.msra.mxu0 0.0
        %396 = vmatpush.msra.mxu0 0.0
        %397 = vmatpush.msra.mxu0 0.0
        %398 = vmatpush.msra.mxu0 0.0
        %399 = vmatpush.msra.mxu0 0.0
        %400 = vmatpush.msra.mxu0 %v383
        %401 = vmatmul.f32.gmra.mxu0 %v305
        %v402 = vpop.f32.mrf.mxu0
        %v403 = vadd.f32 %v380, %v402
        %404 = vdwg.mxu0
        %s405 = scalar_lea.vmem %s3, 1
        %v406 = vld [vmem:[%s405] sm:$0x1]
        %v408 = vperm.slane %v406, 0
        %v410 = vadd.f32 %v403, %v408
        %v411 = vxor.u32 %v410, 2147483648
        %v412 = vmul.f32 %v411, 1.442695
        %v413 = vpow.pop %v412
        %v414 = vadd.f32 %v413, 1.0
        %v415 = vrcp.pop %v414
        %v416 = vmul.f32 %v414, %v415
        %v417 = vsub.f32 1.0, %v416
        %v418 = vmul.f32 %v415, %v417
        %v419 = vadd.f32 %v415, %v418
        %vm420 = vweird.f32 %v414
        %vm421 = vweird.f32 %v415
        %vm422 = vmor %vm420, %vm421
        %v423 = vsel %vm422, %v415, %v419
        %v424 = vand.u32 2147483647, %v414
        %vm425 = vcmp.eq.f32.partialorder %v424, 8.507059e+37
        %v426 = vand.u32 %v414, 2147483648
        %v427 = vor.u32 1.1754944e-38, %v426
        %v428 = vsel %vm425, %v427, %v423
        %v429 = vmul.f32 1.0, %v428
        %s430 = scalar_lea.vmem %s1, 8
        %v431 = vld [vmem:[%s430] sm:$0xf]
        %s432 = scalar_lea.vmem [#allocation4], 64
        %v433 = vld [vmem:[%s432] sm:$0xff]
        %v434 = vld [vmem:[%s432 + $0x8] sm:$0xff]
        %v435 = vld [vmem:[%s432 + $0x10] sm:$0xff]
        %v436 = vld [vmem:[%s432 + $0x18] sm:$0xff]
        %437 = vmatpush.msra.mxu0 0.0
        %438 = vmatpush.msra.mxu0 0.0
        %439 = vmatpush.msra.mxu0 0.0
        %440 = vmatpush.msra.mxu0 0.0
        %441 = vmatpush.msra.mxu0 0.0
        %442 = vmatpush.msra.mxu0 0.0
        %443 = vmatpush.msra.mxu0 0.0
        %444 = vmatpush.msra.mxu0 0.0
        %445 = vmatpush.msra.mxu0 0.0
        %446 = vmatpush.msra.mxu0 0.0
        %447 = vmatpush.msra.mxu0 0.0
        %448 = vmatpush.msra.mxu0 0.0
        %449 = vmatpush.msra.mxu0 %v436
        %450 = vmatpush.msra.mxu0 %v435
        %451 = vmatpush.msra.mxu0 %v434
        %452 = vmatpush.msra.mxu0 %v433
        %453 = vmatmul.f32.gmra.mxu0 %v281
        %v454 = vpop.f32.mrf.mxu0
        %v455 = vadd.f32 0.0, %v454
        %456 = vdwg.mxu0
        %v458 = vsel %vm307, %v431, 0
        %460 = vmatpush.msra.mxu0 0.0
        %461 = vmatpush.msra.mxu0 0.0
        %462 = vmatpush.msra.mxu0 0.0
        %463 = vmatpush.msra.mxu0 0.0
        %464 = vmatpush.msra.mxu0 0.0
        %465 = vmatpush.msra.mxu0 0.0
        %466 = vmatpush.msra.mxu0 0.0
        %467 = vmatpush.msra.mxu0 0.0
        %468 = vmatpush.msra.mxu0 0.0
        %469 = vmatpush.msra.mxu0 0.0
        %470 = vmatpush.msra.mxu0 0.0
        %471 = vmatpush.msra.mxu0 0.0
        %472 = vmatpush.msra.mxu0 0.0
        %473 = vmatpush.msra.mxu0 0.0
        %474 = vmatpush.msra.mxu0 0.0
        %475 = vmatpush.msra.mxu0 %v458
        %476 = vmatmul.f32.gmra.mxu0 %v305
        %v477 = vpop.f32.mrf.mxu0
        %v478 = vadd.f32 %v455, %v477
        %479 = vdwg.mxu0
        %s480 = scalar_lea.vmem %s3, 2
        %v481 = vld [vmem:[%s480] sm:$0x1]
        %v483 = vperm.slane %v481, 0
        %v485 = vadd.f32 %v478, %v483
        %v486 = vtanh.pop %v485
        %s487 = scalar_lea.vmem %s1, 12
        %v488 = vld [vmem:[%s487] sm:$0xf]
        %s489 = scalar_lea.vmem [#allocation4], 96
        %v490 = vld [vmem:[%s489] sm:$0xff]
        %v491 = vld [vmem:[%s489 + $0x8] sm:$0xff]
        %v492 = vld [vmem:[%s489 + $0x10] sm:$0xff]
        %v493 = vld [vmem:[%s489 + $0x18] sm:$0xff]
        %494 = vmatpush.msra.mxu0 0.0
        %495 = vmatpush.msra.mxu0 0.0
        %496 = vmatpush.msra.mxu0 0.0
        %497 = vmatpush.msra.mxu0 0.0
        %498 = vmatpush.msra.mxu0 0.0
        %499 = vmatpush.msra.mxu0 0.0
        %500 = vmatpush.msra.mxu0 0.0
        %501 = vmatpush.msra.mxu0 0.0
        %502 = vmatpush.msra.mxu0 0.0
        %503 = vmatpush.msra.mxu0 0.0
        %504 = vmatpush.msra.mxu0 0.0
        %505 = vmatpush.msra.mxu0 0.0
        %506 = vmatpush.msra.mxu0 %v493
        %507 = vmatpush.msra.mxu0 %v492
        %508 = vmatpush.msra.mxu0 %v491
        %509 = vmatpush.msra.mxu0 %v490
        %510 = vmatmul.f32.gmra.mxu0 %v281
        %v511 = vpop.f32.mrf.mxu0
        %v512 = vadd.f32 0.0, %v511
        %513 = vdwg.mxu0
        %v515 = vsel %vm307, %v488, 0
        %517 = vmatpush.msra.mxu0 0.0
        %518 = vmatpush.msra.mxu0 0.0
        %519 = vmatpush.msra.mxu0 0.0
        %520 = vmatpush.msra.mxu0 0.0
        %521 = vmatpush.msra.mxu0 0.0
        %522 = vmatpush.msra.mxu0 0.0
        %523 = vmatpush.msra.mxu0 0.0
        %524 = vmatpush.msra.mxu0 0.0
        %525 = vmatpush.msra.mxu0 0.0
        %526 = vmatpush.msra.mxu0 0.0
        %527 = vmatpush.msra.mxu0 0.0
        %528 = vmatpush.msra.mxu0 0.0
        %529 = vmatpush.msra.mxu0 0.0
        %530 = vmatpush.msra.mxu0 0.0
        %531 = vmatpush.msra.mxu0 0.0
        %532 = vmatpush.msra.mxu0 %v515
        %533 = vmatmul.f32.gmra.mxu0 %v305
        %v534 = vpop.f32.mrf.mxu0
        %v535 = vadd.f32 %v512, %v534
        %536 = vdwg.mxu0
        %s537 = scalar_lea.vmem %s3, 3
        %v538 = vld [vmem:[%s537] sm:$0x1]
        %v540 = vperm.slane %v538, 0
        %v542 = vadd.f32 %v535, %v540
        %v543 = vxor.u32 %v542, 2147483648
        %v544 = vmul.f32 %v543, 1.442695
        %v545 = vpow.pop %v544
        %v546 = vadd.f32 %v545, 1.0
        %v547 = vrcp.pop %v546
        %v548 = vmul.f32 %v546, %v547
        %v549 = vsub.f32 1.0, %v548
        %v550 = vmul.f32 %v547, %v549
        %v551 = vadd.f32 %v547, %v550
        %vm552 = vweird.f32 %v546
        %vm553 = vweird.f32 %v547
        %vm554 = vmor %vm552, %vm553
        %v555 = vsel %vm554, %v547, %v551
        %v556 = vand.u32 2147483647, %v546
        %vm557 = vcmp.eq.f32.partialorder %v556, 8.507059e+37
        %v558 = vand.u32 %v546, 2147483648
        %v559 = vor.u32 1.1754944e-38, %v558
        %v560 = vsel %vm557, %v559, %v555
        %v561 = vmul.f32 1.0, %v560
        %v562 = vmul.f32 %v429, %v273
        %v563 = vmul.f32 %v354, %v486
        %v564 = vadd.f32 %v562, %v563
        %v565 = vtanh.pop %v564
        %v566 = vmul.f32 %v561, %v565
        %vm567 = vcmask 254976
        %568 = vst.msk [vmem:[#allocation3] sm:$0x3] %vm567, %v564
        %569 = vst.msk [vmem:[#allocation2] sm:$0x3] %vm567, %v566
        %v570 = vld [vmem:[%s4] sm:$0xff]
        %v571 = vld [vmem:[%s4 + $0x8] sm:$0xff]
        %v572 = vld [vmem:[%s4 + $0x10] sm:$0xff]
        %v573 = vld [vmem:[%s4 + $0x18] sm:$0xff]
        %v574 = vld [vmem:[%s5] sm:$0x1]
        %v576 = vperm.slane %v574, 0
        %v579 = vsel %vm279, %v566, 0
        %581 = vmatpush.msra.mxu0 0.0
        %582 = vmatpush.msra.mxu0 0.0
        %583 = vmatpush.msra.mxu0 0.0
        %584 = vmatpush.msra.mxu0 0.0
        %585 = vmatpush.msra.mxu0 0.0
        %586 = vmatpush.msra.mxu0 0.0
        %587 = vmatpush.msra.mxu0 0.0
        %588 = vmatpush.msra.mxu0 0.0
        %589 = vmatpush.msra.mxu0 0.0
        %590 = vmatpush.msra.mxu0 0.0
        %591 = vmatpush.msra.mxu0 0.0
        %592 = vmatpush.msra.mxu0 0.0
        %593 = vmatpush.msra.mxu0 %v573
        %594 = vmatpush.msra.mxu0 %v572
        %595 = vmatpush.msra.mxu0 %v571
        %596 = vmatpush.msra.mxu0 %v570
        %597 = vmatmul.f32.gmra.mxu0 %v579
        %v598 = vpop.f32.mrf.mxu0
        %v599 = vadd.f32 %v576, %v598
        %600 = vdwg.mxu0
        %vm601 = vcmask 25600
        %602 = vst.msk [vmem:[%s263] sm:$0x3] %vm601, %v599
        %p603 = scmp.lt.s32.totalorder %s18, 7
        %s604 = scalar_select %p603, %s18, 7
        %s605 = smul.addr %s604, 2
        %s606 = scalar_lea.vmem %s6, %s605
        // Predicated region
        $region53: #{tpu_custom_call.1} parent=43 // pred_check
          %p607 = pneg %p167
        $region54: #{tpu_custom_call.1} parent=43 // pred_check_branch
          %609 = sbr.rel (%p607) target = $region56
        $region55: #{tpu_custom_call.1} parent=43 // pred_region
          _
        $region56: #{tpu_custom_call.1} parent=43 // pred_fallthru
          _
      $region44: #{tpu_custom_call.1} parent=5 // pred_fallthru
        _
      %p610 = scmp.le.s32.totalorder 2, %s13
      // Predicated region
      $region57: #{tpu_custom_call.1} parent=5 // pred_check
        %p611 = pneg %p610
      $region58: #{tpu_custom_call.1} parent=5 // pred_check_branch
        %613 = sbr.rel (%p611) target = $region60
      $region59: #{tpu_custom_call.1} parent=5 // pred_region
        %s614 = ssub.s32 %s13, 2
        // Predicated region
        $region61: #{tpu_custom_call.1} parent=59 // pred_check
          %p615 = pneg %p173
        $region62: #{tpu_custom_call.1} parent=59 // pred_check_branch
          %617 = sbr.rel (%p615) target = $region64
        $region63: #{tpu_custom_call.1} parent=59 // pred_region
          %p618 = scmp.lt.s32.totalorder %s19, 7
          %s619 = scalar_select %p618, %s19, 7
          %s620 = smul.addr %s619, 2
          %s621 = scalar_lea.vmem %s6, %s620
        $region64: #{tpu_custom_call.1} parent=59 // pred_fallthru
          _
      $region60: #{tpu_custom_call.1} parent=5 // pred_fallthru
        _
    $region6: #{tpu_custom_call.1} parent=1 // loop_footer
      %s17 = sadd.s32 1, %s13
    $region7: #{tpu_custom_call.1} parent=1 // loop_footer_branch
      %12 = sbr.rel target = $region3
    $region8: #{tpu_custom_call.1} parent=1 // loop_exit
      _
    %622 = vsyncpa [#allocation5], 1
    %s623 = scalar_lea.sflag [#allocation5], 1
    %624 = vsyncpa %s623, 1

</llo_original>
